<compile_context>
chip_gen: v7x
topology: tpu7x:2x2x1
jax: 0.10.0
libtpu: 0.0.40
codegen_flags: <defaults>
</compile_context>

<pallas_src>
import functools
import re

import jax
import jax.numpy as jnp
from jax.experimental import pallas as pl
from jax.experimental.pallas import tpu as pltpu

LANES = 128
SUBLANES = 8


def _tpu_generation() -> int:
    """Best-effort TPU generation (5, 6, 7, ...); 0 if unknown."""
    try:
        kind = jax.devices()[0].device_kind  # e.g. "TPU v6e", "TPU v5 lite"
        m = re.search(r"v(\d+)", str(kind))
        return int(m.group(1)) if m else 0
    except Exception:
        return 0


def _softclip_kernel(x_ref, o_ref, *, inv_bound, compute_dtype, approx):
    # x_ref / o_ref: (eff_rows, 128) VMEM tiles.
    x = x_ref[...].astype(compute_dtype)
    denom = 1.0 + jnp.abs(x * inv_bound)          # inv_bound is a baked-in constant
    # reciprocal goes to the otherwise-idle EUP slot; approx=True only when the
    # compute/output dtype is bf16 (error far below bf16's mantissa).
    o_ref[...] = (x * pl.reciprocal(denom, approx=approx)).astype(o_ref.dtype)


def _soft_clip_impl(x: jax.Array, *, bound: float) -> jax.Array:
    orig_shape = x.shape
    orig_dtype = x.dtype
    itemsize = jnp.dtype(orig_dtype).itemsize
    gen = _tpu_generation()

    flat = x.reshape(-1)
    n = flat.shape[0]

    # Dtype-aware native packed tile: f32 -> 8x128, bf16/f16 -> 16x128, int8 -> 32x128.
    pack = max(1, 4 // itemsize)
    row_align = SUBLANES * pack
    chunk = row_align * LANES
    n_pad = pl.cdiv(n, chunk) * chunk
    padded = n_pad != n
    if padded:
        flat = jnp.pad(flat, (0, n_pad - n))

    rows = n_pad // LANES
    x2d = flat.reshape(rows, LANES)

    # Constant byte budget per grid step (dtype-scaled row count).
    tile_bytes = (4 if gen >= 6 else 2) * 1024 * 1024
    block_rows = max(row_align, (tile_bytes // (LANES * itemsize)) // row_align * row_align)

    # Guarantee >=2 grid steps whenever the data spans more than one aligned
    # row-group, so both v7x TensorCores get work via the "parallel" axis.
    half_rows = pl.cdiv(pl.cdiv(rows, 2), row_align) * row_align
    eff_rows = min(block_rows, max(row_align, half_rows))
    grid = (pl.cdiv(rows, eff_rows),)

    # bf16-native math only where the VALU/EUP support it (v6e / v7x).
    use_native = (gen >= 6) and (orig_dtype == jnp.bfloat16)
    compute_dtype = orig_dtype if use_native else jnp.float32
    approx = use_native

    kernel = functools.partial(
        _softclip_kernel,
        inv_bound=1.0 / float(bound),
        compute_dtype=compute_dtype,
        approx=approx,
    )

    cost = pl.CostEstimate(
        flops=3 * n, transcendentals=n, bytes_accessed=2 * n * itemsize
    )

    out2d = pl.pallas_call(
        kernel,
        out_shape=jax.ShapeDtypeStruct((rows, LANES), orig_dtype),
        grid_spec=pltpu.PrefetchScalarGridSpec(
            num_scalar_prefetch=0,
            grid=grid,
            in_specs=[pl.BlockSpec((eff_rows, LANES), lambda i: (i, 0))],
            out_specs=pl.BlockSpec((eff_rows, LANES), lambda i: (i, 0)),
        ),
        compiler_params=pltpu.CompilerParams(
            dimension_semantics=("parallel",),
            vmem_limit_bytes=32 * 1024 * 1024,
        ),
        cost_estimate=cost,
    )(x2d)

    if padded:
        return out2d.reshape(-1)[:n].reshape(orig_shape)
    return out2d.reshape(orig_shape)


_soft_clip_jit = jax.jit(_soft_clip_impl, static_argnames=("bound",))


def soft_clip(x: jax.Array, bound: float = 1.0) -> jax.Array:
    """SoftClip forward: x / (1 + |x / bound|), elementwise, any shape."""
    # Note: bound <= 0 gives inf/undefined results, same as the reference formula.
    return _soft_clip_jit(x, bound=float(bound))


if __name__ == "__main__":
    key = jax.random.PRNGKey(0)
    bound = 1.0

    # NCHW input, matching the PyTorch convention (SoftClip is shape-agnostic).
    x = jax.random.normal(key, (2, 4, 16, 16), dtype=jnp.float32) * 3.0
    y = jax.block_until_ready(soft_clip(x, bound=bound))
    y_ref = x / (1.0 + jnp.abs(x / bound))
    assert y.shape == x.shape and y.dtype == x.dtype
    assert jnp.allclose(y, y_ref, atol=1e-6, rtol=1e-5)

    # Non-aligned shape exercises the minimal-pad + tail-slice path.
    x2 = jax.random.normal(jax.random.PRNGKey(1), (3, 5, 7, 11), dtype=jnp.float32)
    y2 = jax.block_until_ready(soft_clip(x2, bound=2.0))
    y2_ref = x2 / (1.0 + jnp.abs(x2 / 2.0))
    assert y2.shape == x2.shape and jnp.allclose(y2, y2_ref, atol=1e-6, rtol=1e-5)

    # bf16 path (native bf16 math + approx reciprocal on v6e/v7x, f32 on v5e).
    xb = (jax.random.normal(jax.random.PRNGKey(2), (2, 4, 16, 16)) * 3.0).astype(jnp.bfloat16)
    yb = jax.block_until_ready(soft_clip(xb, bound=bound))
    yb_ref = (xb.astype(jnp.float32) / (1.0 + jnp.abs(xb.astype(jnp.float32) / bound))).astype(jnp.bfloat16)
    assert yb.dtype == jnp.bfloat16
    assert jnp.allclose(yb.astype(jnp.float32), yb_ref.astype(jnp.float32), atol=1e-2, rtol=2e-2)

    print("KERNEL_OK")
</pallas_src>

<mosaic_0001>
module attributes {stable_mosaic.version = 11 : i64} {
  func.func @_softclip_kernel(%arg0: i32, %arg1: memref<8x128xf32, #tpu.memory_space<vmem>>, %arg2: memref<8x128xf32, #tpu.memory_space<vmem>>) attributes {dimension_semantics = [#tpu.dimension_semantics<parallel>], iteration_bounds = array<i64: 2>, scalar_prefetch = 0 : i64, scratch_operands = 0 : i64, tpu.core_type = #tpu.core_type<tc>, window_params = [{transform_indices = @transform_0, window_bounds = array<i64: 8, 128>}, {transform_indices = @transform_1, window_bounds = array<i64: 8, 128>}]} {
    %c0 = arith.constant 0 : index
    %c0_0 = arith.constant 0 : index
    %0 = vector.load %arg1[%c0, %c0_0] : memref<8x128xf32, #tpu.memory_space<vmem>>, vector<8x128xf32>
    %cst = arith.constant 1.000000e+00 : f32
    %1 = vector.broadcast %cst : f32 to vector<8x128xf32>
    %2 = arith.mulf %0, %1 : vector<8x128xf32>
    %3 = math.absf %2 : vector<8x128xf32>
    %cst_1 = arith.constant 1.000000e+00 : f32
    %4 = vector.broadcast %cst_1 : f32 to vector<8x128xf32>
    %5 = arith.addf %4, %3 : vector<8x128xf32>
    %6 = tpu.reciprocal %5 : vector<8x128xf32> -> vector<8x128xf32>
    %7 = arith.mulf %0, %6 : vector<8x128xf32>
    %c0_2 = arith.constant 0 : index
    %c0_3 = arith.constant 0 : index
    %8 = vector.load %arg2[%c0_2, %c0_3] : memref<8x128xf32, #tpu.memory_space<vmem>>, vector<8x128xf32>
    tpu.vector_store %arg2[%c0_2, %c0_3], %7 {strides = array<i32>} : memref<8x128xf32, #tpu.memory_space<vmem>>, vector<8x128xf32>,
    return
  }
  func.func @transform_0(%arg0: i32) -> (i32, i32) {
    %c0_i32 = arith.constant 0 : i32
    %c0_i32_0 = arith.constant 0 : i32
    return %arg0, %c0_i32 : i32, i32
  }
  func.func @transform_1(%arg0: i32) -> (i32, i32) {
    %c0_i32 = arith.constant 0 : i32
    %c0_i32_0 = arith.constant 0 : i32
    return %arg0, %c0_i32 : i32, i32
  }
}

</mosaic_0001>

<llo_original>
// kernel: _soft_clip_impl.1
$region0: #{_soft_clip_impl.1}
  #allocation0 [shape = 'u32[]', space=smem, size = 0x4, offset = 0x4, fixed_abs, tag = 'smem constant byte address 0x4 - core index']
  #allocation1 [shape = 'u32[144,128]{1,0:T(1,128)}', space=vmem, size = 0x12000, scoped, tag = 'internal scratch']
  %s0 = inlined_call_operand.vmem [shape: f32[16,128], index: 0, kind: input, shape index: {}]
  %s1 = inlined_call_operand.vmem [shape: f32[16,128], index: 1, kind: output, shape index: {}]
  %s2 = sld [smem:[#allocation0]]
  $region37: #{_soft_clip_impl.1} parent=0
    _
  %s4 = ssub.s32 1, %s2
  %s5 = scalar_select 0, %s4, %s2
  loop: start=0, step=1, limit=4
  $region2: #{_soft_clip_impl.1} parent=0 // loop_pre_header
    _
  $region3: #{_soft_clip_impl.1} parent=0 // loop_header
    %s7 = sphi 0, %s11
    %p8 = scmp.ge.s32.totalorder %s7, 4
    %s17 = sphi 0, %s19
    %s20 = sphi 0, %s17
    %s21 = sphi 0, %s20
    %s37 = sphi 0, %s21
    %s43 = sphi 0, %s45
    %s46 = sphi 0, %s43
    %s47 = sphi 0, %s46
    %s63 = sphi 0, %s47
  $region4: #{_soft_clip_impl.1} parent=0 // loop_header_branch
    %10 = sbr.rel (%p8) target = $region8
  $region5: #{_soft_clip_impl.1} parent=0 // loop_body
    %s12 = ssub.s32 %s7, 1
    %s13 = ssub.s32 %s7, 2
    %s14 = sadd.s32 %s7, 1
    %s15 = ssub.s32 %s7, %s14
    %p16 = scmp.eq.s32.totalorder %s15, 0
    %s18 = sadd.s32 %s17, 1
    %s19 = scalar_select %p16, %s17, %s18
    %p22 = pneg %p16
    %p23 = scmp.eq.s32.totalorder %s7, 1
    %p24 = por %p22, %p23
    %p25 = scmp.ne.s32.totalorder %s17, %s20
    %p26 = scmp.eq.s32.totalorder %s7, 0
    %p27 = por %p25, %p26
    %p28 = scmp.ne.s32.totalorder %s17, %s20
    %p29 = scmp.eq.s32.totalorder %s12, 1
    %p30 = por %p28, %p29
    %p31 = scmp.ne.s32.totalorder %s20, %s21
    %p32 = scmp.eq.s32.totalorder %s12, 0
    %p33 = por %p31, %p32
    %p34 = scmp.ne.s32.totalorder %s20, %s21
    %p35 = scmp.eq.s32.totalorder %s13, 1
    %p36 = por %p34, %p35
    %p38 = scmp.ne.s32.totalorder %s21, %s37
    %p39 = scmp.eq.s32.totalorder %s13, 0
    %p40 = por %p38, %p39
    %s41 = ssub.s32 %s7, %s14
    %p42 = scmp.eq.s32.totalorder %s41, 0
    %s44 = sadd.s32 %s43, 1
    %s45 = scalar_select %p42, %s43, %s44
    %p48 = pneg %p42
    %p49 = scmp.eq.s32.totalorder %s7, 1
    %p50 = por %p48, %p49
    %p51 = scmp.ne.s32.totalorder %s43, %s46
    %p52 = scmp.eq.s32.totalorder %s7, 0
    %p53 = por %p51, %p52
    %p54 = scmp.ne.s32.totalorder %s43, %s46
    %p55 = scmp.eq.s32.totalorder %s12, 1
    %p56 = por %p54, %p55
    %p57 = scmp.ne.s32.totalorder %s46, %s47
    %p58 = scmp.eq.s32.totalorder %s12, 0
    %p59 = por %p57, %p58
    %p60 = scmp.ne.s32.totalorder %s46, %s47
    %p61 = scmp.eq.s32.totalorder %s13, 1
    %p62 = por %p60, %p61
    %p64 = scmp.ne.s32.totalorder %s47, %s63
    %p65 = scmp.eq.s32.totalorder %s13, 0
    %p66 = por %p64, %p65
    %p67 = scmp.le.s32.totalorder 1, %s7
    %p68 = scmp.lt.s32.totalorder %s7, 3
    %p69 = pnand %p67, %p68
    %p70 = pneg %p69
    // Predicated region
    $region9: #{_soft_clip_impl.1} parent=5 // pred_check
      _
    $region10: #{_soft_clip_impl.1} parent=5 // pred_check_branch
      %72 = sbr.rel (%p69) target = $region12
    $region11: #{_soft_clip_impl.1} parent=5 // pred_region
      %s73 = ssub.s32 %s7, 1
    $region12: #{_soft_clip_impl.1} parent=5 // pred_fallthru
      _
    %p74 = scmp.lt.s32.totalorder %s7, 2
    // Predicated region
    $region13: #{_soft_clip_impl.1} parent=5 // pred_check
      %p75 = pneg %p74
    $region14: #{_soft_clip_impl.1} parent=5 // pred_check_branch
      %77 = sbr.rel (%p75) target = $region16
    $region15: #{_soft_clip_impl.1} parent=5 // pred_region
      // Predicated region
      $region17: #{_soft_clip_impl.1} parent=15 // pred_check
        %p78 = pneg %p27
      $region18: #{_soft_clip_impl.1} parent=15 // pred_check_branch
        %80 = sbr.rel (%p78) target = $region20
      $region19: #{_soft_clip_impl.1} parent=15 // pred_region
        %p81 = scmp.lt.s32.totalorder %s7, 1
        %s82 = scalar_select %p81, %s7, 1
        %s83 = smul.addr %s82, 8
        %s84 = scalar_lea.vmem %s0, %s83
      $region20: #{_soft_clip_impl.1} parent=15 // pred_fallthru
        _
    $region16: #{_soft_clip_impl.1} parent=5 // pred_fallthru
      _
    %p85 = scmp.le.s32.totalorder 1, %s7
    %p86 = scmp.lt.s32.totalorder %s7, 3
    %p87 = pnand %p85, %p86
    %p88 = pneg %p87
    // Predicated region
    $region21: #{_soft_clip_impl.1} parent=5 // pred_check
      _
    $region22: #{_soft_clip_impl.1} parent=5 // pred_check_branch
      %90 = sbr.rel (%p87) target = $region24
    $region23: #{_soft_clip_impl.1} parent=5 // pred_region
      %s91 = ssub.s32 %s7, 1
      %p92 = scmp.lt.s32.totalorder %s12, 1
      %s93 = scalar_select %p92, %s12, 1
      %s94 = smul.addr %s93, 8
      %s95 = scalar_lea.vmem %s0, %s94
      %p96 = pneg %p33
      %p97 = pneg %p30
      %p98 = pneg %p59
      %p99 = pneg %p56
      %p100 = scmp.lt.s32.totalorder %s12, 1
      %s101 = scalar_select %p100, %s12, 1
      %s102 = smul.addr %s101, 8
      %s103 = scalar_lea.vmem %s1, %s102
      %p104 = scmp.lt.s32.totalorder %s12, 1
      %s105 = scalar_select %p104, %s12, 1
      %s106 = smul.addr %s105, 8
      %s107 = scalar_lea.vmem %s0, %s106
      %p108 = scmp.lt.s32.totalorder %s12, 1
      %s109 = scalar_select %p108, %s12, 1
      %s110 = smul.addr %s109, 8
      %s111 = scalar_lea.vmem %s1, %s110
      %v112 = vld [vmem:[%s107] sm:$0xff]
      %v113 = vand.u32 2147483647, %v112
      %v114 = vadd.f32 %v113, 1.0
      %v115 = vrcp.pop %v114
      %v116 = vmul.f32 %v112, %v115
      %117 = vst [vmem:[%s111] sm:$0xff] %v116
      %p118 = scmp.lt.s32.totalorder %s12, 1
      %s119 = scalar_select %p118, %s12, 1
      %s120 = smul.addr %s119, 8
      %s121 = scalar_lea.vmem %s1, %s120
      // Predicated region
      $region25: #{_soft_clip_impl.1} parent=23 // pred_check
        %p122 = pneg %p56
      $region26: #{_soft_clip_impl.1} parent=23 // pred_check_branch
        %124 = sbr.rel (%p122) target = $region28
      $region27: #{_soft_clip_impl.1} parent=23 // pred_region
        _
      $region28: #{_soft_clip_impl.1} parent=23 // pred_fallthru
        _
    $region24: #{_soft_clip_impl.1} parent=5 // pred_fallthru
      _
    %p125 = scmp.le.s32.totalorder 2, %s7
    // Predicated region
    $region29: #{_soft_clip_impl.1} parent=5 // pred_check
      %p126 = pneg %p125
    $region30: #{_soft_clip_impl.1} parent=5 // pred_check_branch
      %128 = sbr.rel (%p126) target = $region32
    $region31: #{_soft_clip_impl.1} parent=5 // pred_region
      %s129 = ssub.s32 %s7, 2
      // Predicated region
      $region33: #{_soft_clip_impl.1} parent=31 // pred_check
        %p130 = pneg %p62
      $region34: #{_soft_clip_impl.1} parent=31 // pred_check_branch
        %132 = sbr.rel (%p130) target = $region36
      $region35: #{_soft_clip_impl.1} parent=31 // pred_region
        %p133 = scmp.lt.s32.totalorder %s13, 1
        %s134 = scalar_select %p133, %s13, 1
        %s135 = smul.addr %s134, 8
        %s136 = scalar_lea.vmem %s1, %s135
      $region36: #{_soft_clip_impl.1} parent=31 // pred_fallthru
        _
    $region32: #{_soft_clip_impl.1} parent=5 // pred_fallthru
      _
  $region6: #{_soft_clip_impl.1} parent=0 // loop_footer
    %s11 = sadd.s32 1, %s7
  $region7: #{_soft_clip_impl.1} parent=0 // loop_footer_branch
    %6 = sbr.rel target = $region3
  $region8: #{_soft_clip_impl.1} parent=0 // loop_exit
    _

</llo_original>
